<compile_context>
chip_gen: v6e
topology: v6e:2x2x1
jax: 0.10.0
libtpu: 0.0.40
codegen_flags: <defaults>
</compile_context>

<pallas_src>
import jax
import jax.numpy as jnp
from jax.experimental import pallas as pl
from jax.experimental.pallas import tpu as pltpu


def decoder_kernel(x_ref, w1_ref, b1_ref, wh_ref, bh_ref, pm_ref, pv_ref):
    # Hidden layer: Linear + bias + ReLU (dropout is identity in eval mode).
    # bf16 operands, fp32 accumulation on the MXU.
    h = jnp.dot(x_ref[...], w1_ref[...], preferred_element_type=jnp.float32)
    h = jnp.maximum(h + b1_ref[...], 0.0)

    # Fused mean/var heads: one lane-dense matmul with W_heads = [Wm | Wv].
    h_c = h.astype(wh_ref.dtype)
    heads = jnp.dot(h_c, wh_ref[...], preferred_element_type=jnp.float32)
    heads = heads + bh_ref[...]

    n = pm_ref.shape[-1]
    pm_ref[...] = heads[:, :n].astype(pm_ref.dtype)
    pv_ref[...] = jnp.exp(heads[:, n:]).astype(pv_ref.dtype)   # exp -> EUP slot


def decoder_forward(x, w1, b1, wm, bm, wv, bv, *,
                    block_m=256, compute_dtype=jnp.bfloat16):
    """x: [B, K]; w1: [K, H]; b1: [1, H]; wm/wv: [H, N]; bm/bv: [1, N]."""
    B, K = x.shape
    H = w1.shape[1]
    N = wm.shape[1]

    # --- Fuse the two heads into one [H, 2N] weight / [1, 2N] bias. ---
    w_heads = jnp.concatenate([wm, wv], axis=1)
    b_heads = jnp.concatenate([bm, bv], axis=1).astype(jnp.float32)
    b1_f = b1.astype(jnp.float32)

    # --- Cast MXU operands to bf16 (fp32 accumulation inside the kernel). ---
    x_c = x.astype(compute_dtype)
    w1_c = w1.astype(compute_dtype)
    wh_c = w_heads.astype(compute_dtype)

    # --- Batch tiling. Block shape must be (mult of 8, mult of 128) or full dim. ---
    if B <= block_m:
        tm = B                      # full-dim block, no padding needed
        b_pad = B
    else:
        tm = block_m                # multiple of 8 (and of 128)
        b_pad = pl.cdiv(B, tm) * tm
        if b_pad != B:
            x_c = jnp.pad(x_c, ((0, b_pad - B), (0, 0)))
    nb = b_pad // tm

    cost = pl.CostEstimate(
        flops=2 * B * K * H + 2 * B * H * (2 * N),
        transcendentals=B * N,
        bytes_accessed=(B * K * x_c.dtype.itemsize
                        + K * H * w1_c.dtype.itemsize
                        + H * 2 * N * wh_c.dtype.itemsize
                        + (H + 2 * N) * 4
                        + 2 * B * N * 4),
    )

    pm, pv = pl.pallas_call(
        decoder_kernel,
        out_shape=(jax.ShapeDtypeStruct((b_pad, N), jnp.float32),
                   jax.ShapeDtypeStruct((b_pad, N), jnp.float32)),
        grid_spec=pltpu.PrefetchScalarGridSpec(
            num_scalar_prefetch=0,
            grid=(nb,),
            in_specs=[
                pl.BlockSpec((tm, K), lambda i: (i, 0)),        # x: tiled over batch
                pl.BlockSpec((K, H), lambda i: (0, 0)),         # W1: resident
                pl.BlockSpec((1, H), lambda i: (0, 0)),         # b1: resident
                pl.BlockSpec((H, 2 * N), lambda i: (0, 0)),     # W_heads: resident
                pl.BlockSpec((1, 2 * N), lambda i: (0, 0)),     # b_heads: resident
            ],
            out_specs=[
                pl.BlockSpec((tm, N), lambda i: (i, 0)),        # p_m
                pl.BlockSpec((tm, N), lambda i: (i, 0)),        # p_v
            ],
        ),
        compiler_params=pltpu.CompilerParams(
            dimension_semantics=("parallel",),   # shards batch tiles across TCs (v7x)
            vmem_limit_bytes=32 * 1024 * 1024,
        ),
        cost_estimate=cost,
    )(x_c, w1_c, b1_f, wh_c, b_heads)

    if b_pad != B:
        pm = pm[:B]
        pv = pv[:B]
    # NOTE: for very large out_dim (thousands of genes), add an out_dim grid axis
    # and cache h in a VMEM scratch guarded by @pl.when(j == 0) to avoid recompute.
    return pm, pv


if __name__ == "__main__":
    # Small shapes consistent with the module's forward.
    B = 8
    input_dim = 32
    hidden_dim = 128
    output_dim = 64

    key = jax.random.PRNGKey(0)
    kx, k1, kb1, km, kbm, kv, kbv = jax.random.split(key, 7)

    x = jax.random.normal(kx, (B, input_dim), dtype=jnp.float32)

    # torch Linear weight is [out, in]; we store [in, out] so the kernel does x @ W.
    w1 = jax.random.normal(k1, (input_dim, hidden_dim), dtype=jnp.float32) * 0.1
    b1 = jax.random.normal(kb1, (1, hidden_dim), dtype=jnp.float32) * 0.1
    wm = jax.random.normal(km, (hidden_dim, output_dim), dtype=jnp.float32) * 0.1
    bm = jax.random.normal(kbm, (1, output_dim), dtype=jnp.float32) * 0.1
    wv = jax.random.normal(kv, (hidden_dim, output_dim), dtype=jnp.float32) * 0.1
    bv = jax.random.normal(kbv, (1, output_dim), dtype=jnp.float32) * 0.1

    p_m, p_v = decoder_forward(x, w1, b1, wm, bm, wv, bv)
    jax.block_until_ready((p_m, p_v))

    # Pure-JAX fp32 reference (bf16 operands in the kernel -> loosened tolerances).
    h_ref = jnp.maximum(x @ w1 + b1, 0.0)
    pm_ref = h_ref @ wm + bm
    pv_ref = jnp.exp(h_ref @ wv + bv)
    assert jnp.allclose(p_m, pm_ref, atol=3e-2, rtol=3e-2), "p_m mismatch"
    assert jnp.allclose(p_v, pv_ref, atol=3e-2, rtol=3e-2), "p_v mismatch"

    print("KERNEL_OK")
</pallas_src>

<mosaic_0001>
module attributes {stable_mosaic.version = 11 : i64} {
  func.func @decoder_kernel(%arg0: i32, %arg1: memref<8x32xbf16, #tpu.memory_space<vmem>>, %arg2: memref<32x128xbf16, #tpu.memory_space<vmem>>, %arg3: memref<1x128xf32, #tpu.memory_space<vmem>>, %arg4: memref<128x128xbf16, #tpu.memory_space<vmem>>, %arg5: memref<1x128xf32, #tpu.memory_space<vmem>>, %arg6: memref<8x64xf32, #tpu.memory_space<vmem>>, %arg7: memref<8x64xf32, #tpu.memory_space<vmem>>) attributes {dimension_semantics = [#tpu.dimension_semantics<parallel>], iteration_bounds = array<i64: 1>, scalar_prefetch = 0 : i64, scratch_operands = 0 : i64, tpu.core_type = #tpu.core_type<tc>, window_params = [{transform_indices = @transform_0, window_bounds = array<i64: 8, 32>}, {pipeline_mode = #tpu.pipeline_mode<synchronous>, transform_indices = @transform_1, window_bounds = array<i64: 32, 128>}, {pipeline_mode = #tpu.pipeline_mode<synchronous>, transform_indices = @transform_2, window_bounds = array<i64: 1, 128>}, {pipeline_mode = #tpu.pipeline_mode<synchronous>, transform_indices = @transform_3, window_bounds = array<i64: 128, 128>}, {pipeline_mode = #tpu.pipeline_mode<synchronous>, transform_indices = @transform_4, window_bounds = array<i64: 1, 128>}, {transform_indices = @transform_5, window_bounds = array<i64: 8, 64>}, {transform_indices = @transform_6, window_bounds = array<i64: 8, 64>}]} {
    %c0 = arith.constant 0 : index
    %c0_0 = arith.constant 0 : index
    %0 = vector.load %arg1[%c0, %c0_0] : memref<8x32xbf16, #tpu.memory_space<vmem>>, vector<8x32xbf16>
    %c0_1 = arith.constant 0 : index
    %c0_2 = arith.constant 0 : index
    %1 = vector.load %arg2[%c0_1, %c0_2] : memref<32x128xbf16, #tpu.memory_space<vmem>>, vector<32x128xbf16>
    %cst = arith.constant dense<0.000000e+00> : vector<8x128xf32>
    %2 = tpu.matmul %0, %1, %cst {dimension_numbers = #tpu.dot_dimension_numbers<[1], [0], [0], [1], [0, 0, 1, 1], [], []>} : vector<8x32xbf16>, vector<32x128xbf16>, vector<8x128xf32> -> vector<8x128xf32>
    %c0_3 = arith.constant 0 : index
    %c0_4 = arith.constant 0 : index
    %3 = vector.load %arg3[%c0_3, %c0_4] : memref<1x128xf32, #tpu.memory_space<vmem>>, vector<1x128xf32>
    %4 = vector.broadcast %3 : vector<1x128xf32> to vector<8x128xf32>
    %5 = arith.addf %2, %4 : vector<8x128xf32>
    %cst_5 = arith.constant 0.000000e+00 : f32
    %6 = vector.broadcast %cst_5 : f32 to vector<8x128xf32>
    %7 = arith.maximumf %5, %6 : vector<8x128xf32>
    %8 = arith.truncf %7 : vector<8x128xf32> to vector<8x128xbf16>
    %c0_6 = arith.constant 0 : index
    %c0_7 = arith.constant 0 : index
    %9 = vector.load %arg4[%c0_6, %c0_7] : memref<128x128xbf16, #tpu.memory_space<vmem>>, vector<128x128xbf16>
    %cst_8 = arith.constant dense<0.000000e+00> : vector<8x128xf32>
    %10 = tpu.matmul %8, %9, %cst_8 {dimension_numbers = #tpu.dot_dimension_numbers<[1], [0], [0], [1], [0, 0, 1, 1], [], []>} : vector<8x128xbf16>, vector<128x128xbf16>, vector<8x128xf32> -> vector<8x128xf32>
    %c0_9 = arith.constant 0 : index
    %c0_10 = arith.constant 0 : index
    %11 = vector.load %arg5[%c0_9, %c0_10] : memref<1x128xf32, #tpu.memory_space<vmem>>, vector<1x128xf32>
    %12 = vector.broadcast %11 : vector<1x128xf32> to vector<8x128xf32>
    %13 = arith.addf %10, %12 : vector<8x128xf32>
    %14 = vector.extract_strided_slice %13 {offsets = [0, 0], sizes = [8, 64], strides = [1, 1]} : vector<8x128xf32> to vector<8x64xf32>
    %c0_11 = arith.constant 0 : index
    %c0_12 = arith.constant 0 : index
    %15 = vector.load %arg6[%c0_11, %c0_12] : memref<8x64xf32, #tpu.memory_space<vmem>>, vector<8x64xf32>
    tpu.vector_store %arg6[%c0_11, %c0_12], %14 {strides = array<i32>} : memref<8x64xf32, #tpu.memory_space<vmem>>, vector<8x64xf32>,
    %16 = vector.extract_strided_slice %13 {offsets = [0, 64], sizes = [8, 64], strides = [1, 1]} : vector<8x128xf32> to vector<8x64xf32>
    %17 = math.exp %16 : vector<8x64xf32>
    %c0_13 = arith.constant 0 : index
    %c0_14 = arith.constant 0 : index
    %18 = vector.load %arg7[%c0_13, %c0_14] : memref<8x64xf32, #tpu.memory_space<vmem>>, vector<8x64xf32>
    tpu.vector_store %arg7[%c0_13, %c0_14], %17 {strides = array<i32>} : memref<8x64xf32, #tpu.memory_space<vmem>>, vector<8x64xf32>,
    return
  }
  func.func @transform_0(%arg0: i32) -> (i32, i32) {
    %c0_i32 = arith.constant 0 : i32
    %c0_i32_0 = arith.constant 0 : i32
    return %arg0, %c0_i32 : i32, i32
  }
  func.func @transform_1(%arg0: i32) -> (i32, i32) {
    %c0_i32 = arith.constant 0 : i32
    %c0_i32_0 = arith.constant 0 : i32
    %c0_i32_1 = arith.constant 0 : i32
    return %c0_i32, %c0_i32_0 : i32, i32
  }
  func.func @transform_2(%arg0: i32) -> (i32, i32) {
    %c0_i32 = arith.constant 0 : i32
    %c0_i32_0 = arith.constant 0 : i32
    %c0_i32_1 = arith.constant 0 : i32
    return %c0_i32, %c0_i32_0 : i32, i32
  }
  func.func @transform_3(%arg0: i32) -> (i32, i32) {
    %c0_i32 = arith.constant 0 : i32
    %c0_i32_0 = arith.constant 0 : i32
    %c0_i32_1 = arith.constant 0 : i32
    return %c0_i32, %c0_i32_0 : i32, i32
  }
  func.func @transform_4(%arg0: i32) -> (i32, i32) {
    %c0_i32 = arith.constant 0 : i32
    %c0_i32_0 = arith.constant 0 : i32
    %c0_i32_1 = arith.constant 0 : i32
    return %c0_i32, %c0_i32_0 : i32, i32
  }
  func.func @transform_5(%arg0: i32) -> (i32, i32) {
    %c0_i32 = arith.constant 0 : i32
    %c0_i32_0 = arith.constant 0 : i32
    return %arg0, %c0_i32 : i32, i32
  }
  func.func @transform_6(%arg0: i32) -> (i32, i32) {
    %c0_i32 = arith.constant 0 : i32
    %c0_i32_0 = arith.constant 0 : i32
    return %arg0, %c0_i32 : i32, i32
  }
}

</mosaic_0001>

<llo_original>
// kernel: tpu_custom_call.1
$region0: #{tpu_custom_call.1}
  #allocation0 [shape = 'u32[]', space=smem, size = 0x4, offset = 0x4, fixed_abs, tag = 'smem constant byte address 0x4 - core index']
  #allocation1 [shape = 'u32[144,128]{1,0:T(1,128)}', space=vmem, size = 0x12000, scoped, tag = 'internal scratch']
  %s0 = inlined_call_operand.hbm [shape: bf16[8,32], index: 0, kind: input, shape index: {}]
  %s1 = inlined_call_operand.hbm [shape: bf16[32,128], index: 1, kind: input, shape index: {}]
  %s2 = inlined_call_operand.vmem [shape: f32[1,128], index: 2, kind: input, shape index: {}]
  %s3 = inlined_call_operand.hbm [shape: bf16[128,128], index: 3, kind: input, shape index: {}]
  %s4 = inlined_call_operand.vmem [shape: f32[1,128], index: 4, kind: input, shape index: {}]
  %s5 = inlined_call_operand.hbm [shape: f32[8,64], index: 5, kind: output, shape index: {0}]
  %s6 = inlined_call_operand.hbm [shape: f32[8,64], index: 6, kind: output, shape index: {1}]
  %7 = xla_tuple %s5, %s6
  %s8 = sld [smem:[#allocation0]]
  $region50: #{tpu_custom_call.1} parent=0
    _
  %s10 = ssub.s32 1, %s8
  %s11 = scalar_select 0, %s10, %s8
  $region1: #{tpu_custom_call.1} parent=0
    #allocation2 [shape = 'u8[2048]{0}', space=vmem, size = 0x800, scoped, tag = 'input window, operand 0, single buffered']
    #allocation3 [shape = 's32[1]{0}', space=sflag, size = 0x4, scoped, tag = 'scoped memory for tpu_custom_call.1']
    #allocation4 [shape = 's32[1]{0}', space=sflag, size = 0x4, scoped, tag = 'scoped memory for tpu_custom_call.1']
    #allocation5 [shape = 'u8[8192]{0}', space=vmem, size = 0x2000, scoped, tag = 'input window, operand 1, single buffered']
    #allocation6 [shape = 's32[1]{0}', space=sflag, size = 0x4, scoped, tag = 'scoped memory for tpu_custom_call.1']
    #allocation7 [shape = 'u8[32768]{0}', space=vmem, size = 0x8000, scoped, tag = 'input window, operand 3, single buffered']
    #allocation8 [shape = 'u8[4096]{0}', space=vmem, size = 0x1000, scoped, tag = 'output window, operand 0, single buffered']
    #allocation9 [shape = 'u8[4096]{0}', space=vmem, size = 0x1000, scoped, tag = 'output window, operand 1, single buffered']
    #allocation10 [shape = 's32[1]{0}', space=sflag, size = 0x4, scoped, tag = 'scoped memory for tpu_custom_call.1']
    %12 = vsyncpa [#allocation3], 0
    %13 = vsyncpa [#allocation6], 0
    %14 = vsyncpa [#allocation4], 0
    %15 = vsyncpa [#allocation10], 0
    // Predicated region
    $region2: #{tpu_custom_call.1} parent=1 // pred_check
      _
    $region3: #{tpu_custom_call.1} parent=1 // pred_check_branch
      %17 = sbr.rel (0) target = $region5
    $region4: #{tpu_custom_call.1} parent=1 // pred_region
      %s19 = ssub.s32 64, 64
      %20 = vsyncadd [#allocation3], %s19
      %s22 = sshll.u32 [#allocation2], 4
      %s23 = int_to_ptr.vmem [resolvable:$true] %s22
      %25 = dma.hbm_to_vmem [thread:$0]  %s0, 64, %s23, [#allocation3]
    $region5: #{tpu_custom_call.1} parent=1 // pred_fallthru
      _
    // Predicated region
    $region6: #{tpu_custom_call.1} parent=1 // pred_check
      _
    $region7: #{tpu_custom_call.1} parent=1 // pred_check_branch
      %27 = sbr.rel (0) target = $region9
    $region8: #{tpu_custom_call.1} parent=1 // pred_region
      %s29 = ssub.s32 256, 256
      %30 = vsyncadd [#allocation6], %s29
      %s31 = sshll.u32 [#allocation5], 4
      %s32 = int_to_ptr.vmem [resolvable:$true] %s31
      %37 = dma.hbm_to_vmem [thread:$0]  %s1, 256, %s32, [#allocation6], 64, 64, 4
    $region9: #{tpu_custom_call.1} parent=1 // pred_fallthru
      _
    // Predicated region
    $region10: #{tpu_custom_call.1} parent=1 // pred_check
      _
    $region11: #{tpu_custom_call.1} parent=1 // pred_check_branch
      %39 = sbr.rel (0) target = $region13
    $region12: #{tpu_custom_call.1} parent=1 // pred_region
      _
    $region13: #{tpu_custom_call.1} parent=1 // pred_fallthru
      _
    // Predicated region
    $region14: #{tpu_custom_call.1} parent=1 // pred_check
      _
    $region15: #{tpu_custom_call.1} parent=1 // pred_check_branch
      %41 = sbr.rel (0) target = $region17
    $region16: #{tpu_custom_call.1} parent=1 // pred_region
      %s43 = ssub.s32 1024, 1024
      %44 = vsyncadd [#allocation6], %s43
      %s45 = sshll.u32 [#allocation7], 4
      %s46 = int_to_ptr.vmem [resolvable:$true] %s45
      %51 = dma.hbm_to_vmem [thread:$0]  %s3, 1024, %s46, [#allocation6], 64, 64, 4
    $region17: #{tpu_custom_call.1} parent=1 // pred_fallthru
      _
    // Predicated region
    $region18: #{tpu_custom_call.1} parent=1 // pred_check
      _
    $region19: #{tpu_custom_call.1} parent=1 // pred_check_branch
      %53 = sbr.rel (0) target = $region21
    $region20: #{tpu_custom_call.1} parent=1 // pred_region
      _
    $region21: #{tpu_custom_call.1} parent=1 // pred_fallthru
      _
    // Predicated region
    $region22: #{tpu_custom_call.1} parent=1 // pred_check
      _
    $region23: #{tpu_custom_call.1} parent=1 // pred_check_branch
      %55 = sbr.rel (0) target = $region25
    $region24: #{tpu_custom_call.1} parent=1 // pred_region
      %56 = dma.done [#allocation3], 64
    $region25: #{tpu_custom_call.1} parent=1 // pred_fallthru
      _
    // Predicated region
    $region26: #{tpu_custom_call.1} parent=1 // pred_check
      _
    $region27: #{tpu_custom_call.1} parent=1 // pred_check_branch
      %58 = sbr.rel (0) target = $region29
    $region28: #{tpu_custom_call.1} parent=1 // pred_region
      %59 = dma.done [#allocation6], 256
    $region29: #{tpu_custom_call.1} parent=1 // pred_fallthru
      _
    // Predicated region
    $region30: #{tpu_custom_call.1} parent=1 // pred_check
      _
    $region31: #{tpu_custom_call.1} parent=1 // pred_check_branch
      %61 = sbr.rel (0) target = $region33
    $region32: #{tpu_custom_call.1} parent=1 // pred_region
      %62 = dma.done [#allocation6], 1024
    $region33: #{tpu_custom_call.1} parent=1 // pred_fallthru
      _
    %v64 = vld [vmem:[#allocation2] sm:$0xf]
    %v65 = vld [vmem:[#allocation5] sm:$0xf]
    %v66 = vld [vmem:[#allocation5 + $0x4] sm:$0xf]
    %v67 = vld [vmem:[#allocation5 + $0x8] sm:$0xf]
    %v68 = vld [vmem:[#allocation5 + $0xc] sm:$0xf]
    %v69 = vld [vmem:[%s2] sm:$0x1]
    %v71 = vlaneseq
    %v72 = vshrl.u32 %v71, 7
    %v73 = vsub.s32 0, %v72
    %v74 = vrot.slane %v69, %v73
    %v80 = vunpack.c.l.b16 %v65
    %v81 = vunpack.c.l.b16 %v66
    %v82 = vunpack.c.l.b16 %v67
    %v83 = vunpack.c.l.b16 %v68
    %v84 = vpack.c.b16 %v81, %v80
    %v85 = vpack.c.b16 %v83, %v82
    %vm88 = vcmask 261120
    %v90 = vsel %vm88, %v64, 0
    %92 = vmatprep.subr.bf16.mxu0 0
    %93 = vmatpush1.bf16.msra.mxu0 0
    %94 = vmatprep.subr.bf16.mxu0 0
    %95 = vmatpush1.bf16.msra.mxu0 0
    %96 = vmatprep.subr.bf16.mxu0 0
    %97 = vmatpush1.bf16.msra.mxu0 0
    %98 = vmatprep.subr.bf16.mxu0 0
    %99 = vmatpush1.bf16.msra.mxu0 0
    %100 = vmatprep.subr.bf16.mxu0 0
    %101 = vmatpush1.bf16.msra.mxu0 0
    %102 = vmatprep.subr.bf16.mxu0 0
    %103 = vmatpush1.bf16.msra.mxu0 0
    %104 = vmatprep.subr.bf16.mxu0 0
    %105 = vmatpush1.bf16.msra.mxu0 %v85
    %106 = vmatprep.subr.bf16.mxu0 0
    %107 = vmatpush1.bf16.msra.mxu0 %v84
    %108 = vmatprep.subr.bf16.mxu0 0
    %109 = vmatpush2.bf16.msra.mxu0 0
    %110 = vmatprep.subr.bf16.mxu0 0
    %111 = vmatpush2.bf16.msra.mxu0 0
    %112 = vmatprep.subr.bf16.mxu0 0
    %113 = vmatpush2.bf16.msra.mxu0 0
    %114 = vmatprep.subr.bf16.mxu0 0
    %115 = vmatpush2.bf16.msra.mxu0 0
    %116 = vmatprep.subr.bf16.mxu0 0
    %117 = vmatpush2.bf16.msra.mxu0 0
    %118 = vmatprep.subr.bf16.mxu0 0
    %119 = vmatpush2.bf16.msra.mxu0 0
    %120 = vmatprep.subr.bf16.mxu0 0
    %121 = vmatpush2.bf16.msra.mxu0 0
    %122 = vmatprep.subr.bf16.mxu0 0
    %123 = vmatpush2.bf16.msra.mxu0 0
    %124 = vmatprep.mubr.bf16.mxu0 0
    %125 = vmatmul.mubr.bf16.gmra.mxu0 %v90
    %v126 = vpop.f32.mrf.mxu0
    %v127 = vadd.f32 %v74, %v126
    %v128 = vpop.f32.mrf.mxu0
    %v129 = vpop.f32.mrf.mxu0
    %v130 = vpop.f32.mrf.mxu0
    %131 = vdwg.mxu0
    %v132 = vmax.f32 %v127, 0.0
    %v133 = vpack.c.bf16 %v132, %v132
    %v134 = vld [vmem:[#allocation7] sm:$0xf]
    %v135 = vld [vmem:[#allocation7 + $0x4] sm:$0xf]
    %v136 = vld [vmem:[#allocation7 + $0x8] sm:$0xf]
    %v137 = vld [vmem:[#allocation7 + $0xc] sm:$0xf]
    %v138 = vld [vmem:[#allocation7 + $0x10] sm:$0xf]
    %v139 = vld [vmem:[#allocation7 + $0x14] sm:$0xf]
    %v140 = vld [vmem:[#allocation7 + $0x18] sm:$0xf]
    %v141 = vld [vmem:[#allocation7 + $0x1c] sm:$0xf]
    %v142 = vld [vmem:[#allocation7 + $0x20] sm:$0xf]
    %v143 = vld [vmem:[#allocation7 + $0x24] sm:$0xf]
    %v144 = vld [vmem:[#allocation7 + $0x28] sm:$0xf]
    %v145 = vld [vmem:[#allocation7 + $0x2c] sm:$0xf]
    %v146 = vld [vmem:[#allocation7 + $0x30] sm:$0xf]
    %v147 = vld [vmem:[#allocation7 + $0x34] sm:$0xf]
    %v148 = vld [vmem:[#allocation7 + $0x38] sm:$0xf]
    %v149 = vld [vmem:[#allocation7 + $0x3c] sm:$0xf]
    %v150 = vld [vmem:[%s4] sm:$0x1]
    %v152 = vlaneseq
    %v153 = vshrl.u32 %v152, 7
    %v154 = vsub.s32 0, %v153
    %v155 = vrot.slane %v150, %v154
    %v173 = vunpack.c.l.b16 %v134
    %v174 = vunpack.c.l.b16 %v135
    %v175 = vunpack.c.l.b16 %v136
    %v176 = vunpack.c.l.b16 %v137
    %v177 = vunpack.c.l.b16 %v138
    %v178 = vunpack.c.l.b16 %v139
    %v179 = vunpack.c.l.b16 %v140
    %v180 = vunpack.c.l.b16 %v141
    %v181 = vunpack.c.l.b16 %v142
    %v182 = vunpack.c.l.b16 %v143
    %v183 = vunpack.c.l.b16 %v144
    %v184 = vunpack.c.l.b16 %v145
    %v185 = vunpack.c.l.b16 %v146
    %v186 = vunpack.c.l.b16 %v147
    %v187 = vunpack.c.l.b16 %v148
    %v188 = vunpack.c.l.b16 %v149
    %v189 = vpack.c.b16 %v174, %v173
    %v190 = vpack.c.b16 %v176, %v175
    %v191 = vpack.c.b16 %v178, %v177
    %v192 = vpack.c.b16 %v180, %v179
    %v193 = vpack.c.b16 %v182, %v181
    %v194 = vpack.c.b16 %v184, %v183
    %v195 = vpack.c.b16 %v186, %v185
    %v196 = vpack.c.b16 %v188, %v187
    %205 = vmatprep.subr.bf16.mxu0 0
    %206 = vmatpush1.bf16.msra.mxu0 %v196
    %207 = vmatprep.subr.bf16.mxu0 0
    %208 = vmatpush1.bf16.msra.mxu0 %v195
    %209 = vmatprep.subr.bf16.mxu0 0
    %210 = vmatpush1.bf16.msra.mxu0 %v194
    %211 = vmatprep.subr.bf16.mxu0 0
    %212 = vmatpush1.bf16.msra.mxu0 %v193
    %213 = vmatprep.subr.bf16.mxu0 0
    %214 = vmatpush1.bf16.msra.mxu0 %v192
    %215 = vmatprep.subr.bf16.mxu0 0
    %216 = vmatpush1.bf16.msra.mxu0 %v191
    %217 = vmatprep.subr.bf16.mxu0 0
    %218 = vmatpush1.bf16.msra.mxu0 %v190
    %219 = vmatprep.subr.bf16.mxu0 0
    %220 = vmatpush1.bf16.msra.mxu0 %v189
    %221 = vmatprep.subr.bf16.mxu0 0
    %222 = vmatpush2.bf16.msra.mxu0 0
    %223 = vmatprep.subr.bf16.mxu0 0
    %224 = vmatpush2.bf16.msra.mxu0 0
    %225 = vmatprep.subr.bf16.mxu0 0
    %226 = vmatpush2.bf16.msra.mxu0 0
    %227 = vmatprep.subr.bf16.mxu0 0
    %228 = vmatpush2.bf16.msra.mxu0 0
    %229 = vmatprep.subr.bf16.mxu0 0
    %230 = vmatpush2.bf16.msra.mxu0 0
    %231 = vmatprep.subr.bf16.mxu0 0
    %232 = vmatpush2.bf16.msra.mxu0 0
    %233 = vmatprep.subr.bf16.mxu0 0
    %234 = vmatpush2.bf16.msra.mxu0 0
    %235 = vmatprep.subr.bf16.mxu0 0
    %236 = vmatpush2.bf16.msra.mxu0 0
    %237 = vmatprep.mubr.bf16.mxu0 0
    %238 = vmatmul.mubr.bf16.gmra.mxu0 %v133
    %v239 = vpop.f32.mrf.mxu0
    %v240 = vadd.f32 %v155, %v239
    %v241 = vpop.f32.mrf.mxu0
    %v242 = vpop.f32.mrf.mxu0
    %v243 = vpop.f32.mrf.mxu0
    %244 = vdwg.mxu0
    %vm245 = vcmask 523264
    %246 = vst.msk [vmem:[#allocation8] sm:$0xff] %vm245, %v240
    %v247 = vmul.f32 %v240, 1.442695
    %v248 = vpow.pop %v247
    %250 = vrot.lane.b32.xlu0 %v248, 64
    %v251 = vpop.permute.xlu0 %250
    %253 = vst.msk [vmem:[#allocation9] sm:$0xff] %vm245, %v251
    // Predicated region
    $region34: #{tpu_custom_call.1} parent=1 // pred_check
      _
    $region35: #{tpu_custom_call.1} parent=1 // pred_check_branch
      %255 = sbr.rel (0) target = $region37
    $region36: #{tpu_custom_call.1} parent=1 // pred_region
      %s257 = ssub.s32 128, 128
      %258 = vsyncadd [#allocation4], %s257
      %s260 = sshll.u32 [#allocation8], 4
      %s261 = int_to_ptr.vmem [resolvable:$true] %s260
      %263 = dma.vmem_to_hbm [thread:$0]  %s261, 128, %s5, [#allocation4]
    $region37: #{tpu_custom_call.1} parent=1 // pred_fallthru
      _
    // Predicated region
    $region38: #{tpu_custom_call.1} parent=1 // pred_check
      _
    $region39: #{tpu_custom_call.1} parent=1 // pred_check_branch
      %265 = sbr.rel (0) target = $region41
    $region40: #{tpu_custom_call.1} parent=1 // pred_region
      %s267 = ssub.s32 128, 128
      %268 = vsyncadd [#allocation10], %s267
      %s270 = sshll.u32 [#allocation9], 4
      %s271 = int_to_ptr.vmem [resolvable:$true] %s270
      %273 = dma.vmem_to_hbm [thread:$0]  %s271, 128, %s6, [#allocation10]
    $region41: #{tpu_custom_call.1} parent=1 // pred_fallthru
      _
    // Predicated region
    $region42: #{tpu_custom_call.1} parent=1 // pred_check
      _
    $region43: #{tpu_custom_call.1} parent=1 // pred_check_branch
      %275 = sbr.rel (0) target = $region45
    $region44: #{tpu_custom_call.1} parent=1 // pred_region
      %276 = dma.done [#allocation4], 128
    $region45: #{tpu_custom_call.1} parent=1 // pred_fallthru
      _
    // Predicated region
    $region46: #{tpu_custom_call.1} parent=1 // pred_check
      _
    $region47: #{tpu_custom_call.1} parent=1 // pred_check_branch
      %278 = sbr.rel (0) target = $region49
    $region48: #{tpu_custom_call.1} parent=1 // pred_region
      %279 = dma.done [#allocation10], 128
    $region49: #{tpu_custom_call.1} parent=1 // pred_fallthru
      _
    %280 = vsyncpa [#allocation3], 1
    %281 = vsyncpa [#allocation6], 1
    %282 = vsyncpa [#allocation4], 1
    %283 = vsyncpa [#allocation10], 1

</llo_original>
